<compile_context>
chip_gen: v7x
topology: tpu7x:2x2x1
jax: 0.10.0
libtpu: 0.0.40
codegen_flags: <defaults>
</compile_context>

<pallas_src>
import functools

import numpy as np
import jax
import jax.numpy as jnp
from jax.experimental import pallas as pl
from jax.experimental.pallas import tpu as pltpu


def _sepconv_bn_kernel(x_ref, b_ref, gamma_ref, beta_ref, out_ref, *, cout):
    """Fused ReLU -> separable conv (banded matmul) -> BatchNorm2d.

    x_ref     : (N, Hpad, Wpad*Cin)       zero-padded input, (W, Cin) folded on lanes
    b_ref     : (K, Wpad*Cin, Wout*Cout)  banded depthwise*pointwise weight
    gamma_ref : (1, Wout*Cout)            BN gamma tiled over the w positions
    beta_ref  : (1, Wout*Cout)            BN beta tiled over the w positions
    out_ref   : (N*Hout, Wout*Cout)       lane-dense output (lane j -> w*Cout + o)
    """
    N, Hpad, WCin = x_ref.shape
    K = b_ref.shape[0]
    NHout, WCout = out_ref.shape
    Hout = NHout // N
    Wout = WCout // cout

    # ReLU + separable conv as K row-shifted banded matmuls on the MXU.
    # (relu(0) == 0, so ReLU applied after zero padding is equivalent.)
    acc = None
    for kh in range(K):
        a = jnp.maximum(x_ref[:, kh:kh + Hout, :], 0.0).reshape(NHout, WCin)
        t = jnp.dot(a, b_ref[kh], preferred_element_type=jnp.float32)
        acc = t if acc is None else acc + t

    # BatchNorm2d with training-mode batch statistics, single pass.
    s1 = jnp.sum(acc, axis=0, keepdims=True)          # (1, WCout)
    s2 = jnp.sum(acc * acc, axis=0, keepdims=True)    # (1, WCout)

    # Fold the Wout lanes of each channel (lanes with equal j % cout) into
    # per-channel totals broadcast back to every lane of that channel.
    # Exact f32 adds via XLU lane rolls; log2(Wout) steps when Wout is pow2.
    if Wout & (Wout - 1) == 0:
        span = WCout // 2
        while span >= cout:
            s1 = s1 + pltpu.roll(s1, shift=span, axis=1)
            s2 = s2 + pltpu.roll(s2, shift=span, axis=1)
            span //= 2
    else:
        t1, t2 = s1, s2
        for g in range(1, Wout):
            t1 = t1 + pltpu.roll(s1, shift=g * cout, axis=1)
            t2 = t2 + pltpu.roll(s2, shift=g * cout, axis=1)
        s1, s2 = t1, t2

    inv_n = 1.0 / float(NHout * Wout)                 # 1 / (N * Hout * Wout)
    mean = s1 * inv_n
    var = s2 * inv_n - mean * mean                    # biased batch variance
    scale = jax.lax.rsqrt(var + 1e-5) * gamma_ref[...]
    shift = beta_ref[...] - mean * scale
    out_ref[...] = (acc * scale + shift).astype(out_ref.dtype)


def sepconv_bn(x_nchw, w_dw, w_pw, gamma, beta, *, padding):
    """x_nchw: (N, Cin, H, W); w_dw: (Cin, 1, K, K); w_pw: (Cout, Cin, 1, 1)."""
    N, Cin, H, W = x_nchw.shape
    Cout = w_pw.shape[0]
    K = w_dw.shape[-1]
    p = padding
    Hpad, Wpad = H + 2 * p, W + 2 * p
    Hout, Wout = Hpad - K + 1, Wpad - K + 1

    # ---- layout plumbing (outside the kernel) ----
    # NCHW -> NHWC, zero pad, fold (W, Cin) onto the lane axis.
    x_nhwc = jnp.transpose(x_nchw, (0, 2, 3, 1))
    x_pad = jnp.pad(x_nhwc, ((0, 0), (p, p), (p, p), (0, 0)))
    x2d = x_pad.reshape(N, Hpad, Wpad * Cin).astype(jnp.float32)

    # ---- fold depthwise * pointwise into one banded weight ----
    # B[kh, wp*Cin + c, w*Cout + o] = wdw[kh, kw, c] * wpw[c, o], kw = wp - w.
    wdw_kkc = jnp.transpose(w_dw[:, 0, :, :], (1, 2, 0)).astype(jnp.float32)  # (Kh, Kw, Cin)
    wpw_co = jnp.transpose(w_pw[:, :, 0, 0], (1, 0)).astype(jnp.float32)      # (Cin, Cout)
    P = np.zeros((K, Wpad, Wout), np.float32)          # static band structure
    for kw in range(K):
        P[kw, kw + np.arange(Wout), np.arange(Wout)] = 1.0
    B = jnp.einsum("xpw,hxc,co->hpcwo", jnp.asarray(P), wdw_kkc, wpw_co)
    B = B.reshape(K, Wpad * Cin, Wout * Cout)

    # BN affine params tiled onto the folded (w, o) lane axis.
    gamma_l = jnp.tile(gamma.astype(jnp.float32).reshape(Cout), Wout).reshape(1, Wout * Cout)
    beta_l = jnp.tile(beta.astype(jnp.float32).reshape(Cout), Wout).reshape(1, Wout * Cout)

    kernel = functools.partial(_sepconv_bn_kernel, cout=Cout)
    # TODO(synk): when N*Hout grows (or to use both v7x TensorCores), tile the
    # row axis with a grid and accumulate the BN sums across grid steps before
    # a finalize step; at this size a single resident block is optimal.
    out2d = pl.pallas_call(
        kernel,
        out_shape=jax.ShapeDtypeStruct((N * Hout, Wout * Cout), jnp.float32),
        in_specs=[pl.BlockSpec(memory_space=pltpu.MemorySpace.VMEM)] * 4,
        out_specs=pl.BlockSpec(memory_space=pltpu.MemorySpace.VMEM),
    )(x2d, B, gamma_l, beta_l)

    # (N*Hout, Wout*Cout) is a contiguous view of (N, Hout, Wout, Cout): free
    # reshape, then one transpose back to the PyTorch NCHW convention.
    out_nhwc = out2d.reshape(N, Hout, Wout, Cout)
    return jnp.transpose(out_nhwc, (0, 3, 1, 2))


def _reference(x_nchw, w_dw, w_pw, gamma, beta, padding):
    """Pure-JAX reference mirroring the PyTorch module (BN in training mode)."""
    Cin = x_nchw.shape[1]
    x = jnp.maximum(x_nchw, 0.0)
    dw = jax.lax.conv_general_dilated(
        x, w_dw, window_strides=(1, 1),
        padding=[(padding, padding), (padding, padding)],
        feature_group_count=Cin,
        dimension_numbers=("NCHW", "OIHW", "NCHW"))
    pw = jax.lax.conv_general_dilated(
        dw, w_pw, window_strides=(1, 1), padding="VALID",
        dimension_numbers=("NCHW", "OIHW", "NCHW"))
    mean = pw.mean(axis=(0, 2, 3), keepdims=True)
    var = ((pw - mean) ** 2).mean(axis=(0, 2, 3), keepdims=True)
    g = gamma.reshape(1, -1, 1, 1)
    b = beta.reshape(1, -1, 1, 1)
    return (pw - mean) * jax.lax.rsqrt(var + 1e-5) * g + b


if __name__ == "__main__":
    # SepConvBN(C_in=4, C_out=8, kernel_size=3, padding=1) on x (2, 4, 16, 16).
    N, C_in, C_out, H, W, K, PAD = 2, 4, 8, 16, 16, 3, 1

    key = jax.random.PRNGKey(0)
    kx, kdw, kpw = jax.random.split(key, 3)

    x = jax.random.normal(kx, (N, C_in, H, W), dtype=jnp.float32)
    # PyTorch weight shapes: depthwise (Cin,1,K,K), pointwise (Cout,Cin,1,1);
    # BN affine init gamma=1, beta=0.
    w_dw = 0.1 * jax.random.normal(kdw, (C_in, 1, K, K), dtype=jnp.float32)
    w_pw = 0.1 * jax.random.normal(kpw, (C_out, C_in, 1, 1), dtype=jnp.float32)
    gamma = jnp.ones((C_out,), dtype=jnp.float32)
    beta = jnp.zeros((C_out,), dtype=jnp.float32)

    out = sepconv_bn(x, w_dw, w_pw, gamma, beta, padding=PAD)
    out = jax.block_until_ready(out)

    ref = _reference(x, w_dw, w_pw, gamma, beta, PAD)
    assert out.shape == (N, C_out, H, W), out.shape
    max_err = float(jnp.max(jnp.abs(out - ref)))
    assert jnp.allclose(out, ref, atol=2e-4, rtol=2e-4), max_err

    print("KERNEL_OK")
</pallas_src>

<mosaic_0001>
module attributes {stable_mosaic.version = 11 : i64} {
  func.func @_sepconv_bn_kernel(%arg0: memref<2x18x72xf32, #tpu.memory_space<vmem>>, %arg1: memref<3x72x128xf32, #tpu.memory_space<vmem>>, %arg2: memref<1x128xf32, #tpu.memory_space<vmem>>, %arg3: memref<1x128xf32, #tpu.memory_space<vmem>>, %arg4: memref<32x128xf32, #tpu.memory_space<vmem>>) attributes {dimension_semantics = [], scalar_prefetch = 0 : i64, scratch_operands = 0 : i64, tpu.core_type = #tpu.core_type<tc>} {
    %c0 = arith.constant 0 : index
    %c0_0 = arith.constant 0 : index
    %c0_1 = arith.constant 0 : index
    %0 = vector.load %arg0[%c0, %c0_0, %c0_1] : memref<2x18x72xf32, #tpu.memory_space<vmem>>, vector<2x16x72xf32>
    %cst = arith.constant 0.000000e+00 : f32
    %1 = vector.broadcast %cst : f32 to vector<2x16x72xf32>
    %2 = arith.maximumf %0, %1 : vector<2x16x72xf32>
    %3 = vector.shape_cast %2 : vector<2x16x72xf32> to vector<32x72xf32>
    %c0_2 = arith.constant 0 : index
    %c0_3 = arith.constant 0 : index
    %c0_4 = arith.constant 0 : index
    %4 = vector.load %arg1[%c0_2, %c0_3, %c0_4] : memref<3x72x128xf32, #tpu.memory_space<vmem>>, vector<1x72x128xf32>
    %5 = vector.shape_cast %4 : vector<1x72x128xf32> to vector<72x128xf32>
    %cst_5 = arith.constant dense<0.000000e+00> : vector<32x128xf32>
    %6 = tpu.matmul %3, %5, %cst_5 {dimension_numbers = #tpu.dot_dimension_numbers<[1], [0], [0], [1], [0, 0, 1, 1], [], []>} : vector<32x72xf32>, vector<72x128xf32>, vector<32x128xf32> -> vector<32x128xf32>
    %c0_6 = arith.constant 0 : index
    %c1 = arith.constant 1 : index
    %c0_7 = arith.constant 0 : index
    %7 = vector.load %arg0[%c0_6, %c1, %c0_7] : memref<2x18x72xf32, #tpu.memory_space<vmem>>, vector<2x16x72xf32>
    %cst_8 = arith.constant 0.000000e+00 : f32
    %8 = vector.broadcast %cst_8 : f32 to vector<2x16x72xf32>
    %9 = arith.maximumf %7, %8 : vector<2x16x72xf32>
    %10 = vector.shape_cast %9 : vector<2x16x72xf32> to vector<32x72xf32>
    %c1_9 = arith.constant 1 : index
    %c0_10 = arith.constant 0 : index
    %c0_11 = arith.constant 0 : index
    %11 = vector.load %arg1[%c1_9, %c0_10, %c0_11] : memref<3x72x128xf32, #tpu.memory_space<vmem>>, vector<1x72x128xf32>
    %12 = vector.shape_cast %11 : vector<1x72x128xf32> to vector<72x128xf32>
    %cst_12 = arith.constant dense<0.000000e+00> : vector<32x128xf32>
    %13 = tpu.matmul %10, %12, %cst_12 {dimension_numbers = #tpu.dot_dimension_numbers<[1], [0], [0], [1], [0, 0, 1, 1], [], []>} : vector<32x72xf32>, vector<72x128xf32>, vector<32x128xf32> -> vector<32x128xf32>
    %14 = arith.addf %6, %13 : vector<32x128xf32>
    %c0_13 = arith.constant 0 : index
    %c2 = arith.constant 2 : index
    %c0_14 = arith.constant 0 : index
    %15 = vector.load %arg0[%c0_13, %c2, %c0_14] : memref<2x18x72xf32, #tpu.memory_space<vmem>>, vector<2x16x72xf32>
    %cst_15 = arith.constant 0.000000e+00 : f32
    %16 = vector.broadcast %cst_15 : f32 to vector<2x16x72xf32>
    %17 = arith.maximumf %15, %16 : vector<2x16x72xf32>
    %18 = vector.shape_cast %17 : vector<2x16x72xf32> to vector<32x72xf32>
    %c2_16 = arith.constant 2 : index
    %c0_17 = arith.constant 0 : index
    %c0_18 = arith.constant 0 : index
    %19 = vector.load %arg1[%c2_16, %c0_17, %c0_18] : memref<3x72x128xf32, #tpu.memory_space<vmem>>, vector<1x72x128xf32>
    %20 = vector.shape_cast %19 : vector<1x72x128xf32> to vector<72x128xf32>
    %cst_19 = arith.constant dense<0.000000e+00> : vector<32x128xf32>
    %21 = tpu.matmul %18, %20, %cst_19 {dimension_numbers = #tpu.dot_dimension_numbers<[1], [0], [0], [1], [0, 0, 1, 1], [], []>} : vector<32x72xf32>, vector<72x128xf32>, vector<32x128xf32> -> vector<32x128xf32>
    %22 = arith.addf %14, %21 : vector<32x128xf32>
    %cst_20 = arith.constant dense<0.000000e+00> : vector<128xf32>
    %23 = vector.multi_reduction <add>, %22, %cst_20 [0] : vector<32x128xf32> to vector<128xf32>
    %24 = vector.shape_cast %23 : vector<128xf32> to vector<1x128xf32>
    %25 = arith.mulf %22, %22 : vector<32x128xf32>
    %cst_21 = arith.constant dense<0.000000e+00> : vector<128xf32>
    %26 = vector.multi_reduction <add>, %25, %cst_21 [0] : vector<32x128xf32> to vector<128xf32>
    %27 = vector.shape_cast %26 : vector<128xf32> to vector<1x128xf32>
    %c64_i32 = arith.constant 64 : i32
    %28 = tpu.dynamic_rotate %24 by %c64_i32 dim 1 : vector<1x128xf32>, i32 -> vector<1x128xf32>
    %29 = arith.addf %24, %28 : vector<1x128xf32>
    %c64_i32_22 = arith.constant 64 : i32
    %30 = tpu.dynamic_rotate %27 by %c64_i32_22 dim 1 : vector<1x128xf32>, i32 -> vector<1x128xf32>
    %31 = arith.addf %27, %30 : vector<1x128xf32>
    %c32_i32 = arith.constant 32 : i32
    %32 = tpu.dynamic_rotate %29 by %c32_i32 dim 1 : vector<1x128xf32>, i32 -> vector<1x128xf32>
    %33 = arith.addf %29, %32 : vector<1x128xf32>
    %c32_i32_23 = arith.constant 32 : i32
    %34 = tpu.dynamic_rotate %31 by %c32_i32_23 dim 1 : vector<1x128xf32>, i32 -> vector<1x128xf32>
    %35 = arith.addf %31, %34 : vector<1x128xf32>
    %c16_i32 = arith.constant 16 : i32
    %36 = tpu.dynamic_rotate %33 by %c16_i32 dim 1 : vector<1x128xf32>, i32 -> vector<1x128xf32>
    %37 = arith.addf %33, %36 : vector<1x128xf32>
    %c16_i32_24 = arith.constant 16 : i32
    %38 = tpu.dynamic_rotate %35 by %c16_i32_24 dim 1 : vector<1x128xf32>, i32 -> vector<1x128xf32>
    %39 = arith.addf %35, %38 : vector<1x128xf32>
    %c8_i32 = arith.constant 8 : i32
    %40 = tpu.dynamic_rotate %37 by %c8_i32 dim 1 : vector<1x128xf32>, i32 -> vector<1x128xf32>
    %41 = arith.addf %37, %40 : vector<1x128xf32>
    %c8_i32_25 = arith.constant 8 : i32
    %42 = tpu.dynamic_rotate %39 by %c8_i32_25 dim 1 : vector<1x128xf32>, i32 -> vector<1x128xf32>
    %43 = arith.addf %39, %42 : vector<1x128xf32>
    %cst_26 = arith.constant 0.001953125 : f32
    %44 = vector.broadcast %cst_26 : f32 to vector<1x128xf32>
    %45 = arith.mulf %41, %44 : vector<1x128xf32>
    %cst_27 = arith.constant 0.001953125 : f32
    %46 = vector.broadcast %cst_27 : f32 to vector<1x128xf32>
    %47 = arith.mulf %43, %46 : vector<1x128xf32>
    %48 = arith.mulf %45, %45 : vector<1x128xf32>
    %49 = arith.subf %47, %48 : vector<1x128xf32>
    %cst_28 = arith.constant 9.99999974E-6 : f32
    %50 = vector.broadcast %cst_28 : f32 to vector<1x128xf32>
    %51 = arith.addf %49, %50 : vector<1x128xf32>
    %52 = math.rsqrt %51 : vector<1x128xf32>
    %c0_29 = arith.constant 0 : index
    %c0_30 = arith.constant 0 : index
    %53 = vector.load %arg2[%c0_29, %c0_30] : memref<1x128xf32, #tpu.memory_space<vmem>>, vector<1x128xf32>
    %54 = arith.mulf %52, %53 : vector<1x128xf32>
    %c0_31 = arith.constant 0 : index
    %c0_32 = arith.constant 0 : index
    %55 = vector.load %arg3[%c0_31, %c0_32] : memref<1x128xf32, #tpu.memory_space<vmem>>, vector<1x128xf32>
    %56 = arith.mulf %45, %54 : vector<1x128xf32>
    %57 = arith.subf %55, %56 : vector<1x128xf32>
    %58 = vector.broadcast %54 : vector<1x128xf32> to vector<32x128xf32>
    %59 = arith.mulf %22, %58 : vector<32x128xf32>
    %60 = vector.broadcast %57 : vector<1x128xf32> to vector<32x128xf32>
    %61 = arith.addf %59, %60 : vector<32x128xf32>
    %c0_33 = arith.constant 0 : index
    %c0_34 = arith.constant 0 : index
    %62 = vector.load %arg4[%c0_33, %c0_34] : memref<32x128xf32, #tpu.memory_space<vmem>>, vector<32x128xf32>
    tpu.vector_store %arg4[%c0_33, %c0_34], %61 {strides = array<i32>} : memref<32x128xf32, #tpu.memory_space<vmem>>, vector<32x128xf32>,
    return
  }
}

</mosaic_0001>

<llo_original>
// kernel: tpu_custom_call.1
$region0: #{tpu_custom_call.1}
  #allocation0 [shape = 'u32[]', space=smem, size = 0x4, offset = 0x4, fixed_abs, tag = 'smem constant byte address 0x4 - core index']
  #allocation1 [shape = 'u32[144,128]{1,0:T(1,128)}', space=vmem, size = 0x12000, scoped, tag = 'internal scratch']
  %s0 = inlined_call_operand.vmem [shape: f32[2,18,72], index: 0, kind: input, shape index: {}]
  %s1 = inlined_call_operand.hbm [shape: f32[3,72,128], index: 1, kind: input, shape index: {}]
  %s2 = inlined_call_operand.vmem [shape: f32[1,128], index: 2, kind: input, shape index: {}]
  %s3 = inlined_call_operand.vmem [shape: f32[1,128], index: 3, kind: input, shape index: {}]
  %s4 = inlined_call_operand.hbm [shape: f32[32,128], index: 4, kind: output, shape index: {}]
  %s5 = sld [smem:[#allocation0]]
  $region30: #{tpu_custom_call.1} parent=0
    _
  %s7 = ssub.s32 1, %s5
  %s8 = scalar_select 0, %s7, %s5
  $region1: #{tpu_custom_call.1} parent=0
    #allocation2 [shape = 'u8[110592]{0}', space=vmem, size = 0x1b000, scoped, tag = 'input window, operand 1, single buffered']
    #allocation3 [shape = 's32[1]{0}', space=sflag, size = 0x4, scoped, tag = 'scoped memory for tpu_custom_call.1']
    #allocation4 [shape = 's32[1]{0}', space=sflag, size = 0x4, scoped, tag = 'scoped memory for tpu_custom_call.1']
    #allocation5 [shape = 'u8[16384]{0}', space=vmem, size = 0x4000, scoped, tag = 'output window, operand 0, single buffered']
    %9 = vsyncpa [#allocation3], 0
    %10 = vsyncpa [#allocation4], 0
    // Predicated region
    $region2: #{tpu_custom_call.1} parent=1 // pred_check
      _
    $region3: #{tpu_custom_call.1} parent=1 // pred_check_branch
      %12 = sbr.rel (0) target = $region5
    $region4: #{tpu_custom_call.1} parent=1 // pred_region
      _
    $region5: #{tpu_custom_call.1} parent=1 // pred_fallthru
      _
    // Predicated region
    $region6: #{tpu_custom_call.1} parent=1 // pred_check
      _
    $region7: #{tpu_custom_call.1} parent=1 // pred_check_branch
      %14 = sbr.rel (0) target = $region9
    $region8: #{tpu_custom_call.1} parent=1 // pred_region
      %s16 = ssub.s32 3456, 3456
      %17 = vsyncadd [#allocation3], %s16
      %s18 = sshll.u32 [#allocation2], 4
      %s19 = int_to_ptr.vmem [resolvable:$true] %s18
      %24 = dma.hbm_to_vmem [thread:$0]  %s1, 3456, %s19, [#allocation3], 128, 128, 8
    $region9: #{tpu_custom_call.1} parent=1 // pred_fallthru
      _
    // Predicated region
    $region10: #{tpu_custom_call.1} parent=1 // pred_check
      _
    $region11: #{tpu_custom_call.1} parent=1 // pred_check_branch
      %26 = sbr.rel (0) target = $region13
    $region12: #{tpu_custom_call.1} parent=1 // pred_region
      _
    $region13: #{tpu_custom_call.1} parent=1 // pred_fallthru
      _
    // Predicated region
    $region14: #{tpu_custom_call.1} parent=1 // pred_check
      _
    $region15: #{tpu_custom_call.1} parent=1 // pred_check_branch
      %28 = sbr.rel (0) target = $region17
    $region16: #{tpu_custom_call.1} parent=1 // pred_region
      _
    $region17: #{tpu_custom_call.1} parent=1 // pred_fallthru
      _
    // Predicated region
    $region18: #{tpu_custom_call.1} parent=1 // pred_check
      _
    $region19: #{tpu_custom_call.1} parent=1 // pred_check_branch
      %30 = sbr.rel (0) target = $region21
    $region20: #{tpu_custom_call.1} parent=1 // pred_region
      %31 = dma.done [#allocation3], 3456
    $region21: #{tpu_custom_call.1} parent=1 // pred_fallthru
      _
    %v32 = vld [vmem:[%s0] sm:$0xff]
    %v33 = vld [vmem:[%s0 + $0x8] sm:$0xff]
    %v34 = vld [vmem:[%s0 + $0x18] sm:$0xff]
    %v35 = vld [vmem:[%s0 + $0x20] sm:$0xff]
    %v36 = vmax.f32 %v32, 0.0
    %v37 = vmax.f32 %v33, 0.0
    %v38 = vmax.f32 %v34, 0.0
    %v39 = vmax.f32 %v35, 0.0
    %v40 = vld [vmem:[#allocation2] sm:$0xff]
    %v41 = vld [vmem:[#allocation2 + $0x8] sm:$0xff]
    %v42 = vld [vmem:[#allocation2 + $0x10] sm:$0xff]
    %v43 = vld [vmem:[#allocation2 + $0x18] sm:$0xff]
    %v44 = vld [vmem:[#allocation2 + $0x20] sm:$0xff]
    %v45 = vld [vmem:[#allocation2 + $0x28] sm:$0xff]
    %v46 = vld [vmem:[#allocation2 + $0x30] sm:$0xff]
    %v47 = vld [vmem:[#allocation2 + $0x38] sm:$0xff]
    %v48 = vld [vmem:[#allocation2 + $0x40] sm:$0xff]
    %v49 = vld [vmem:[%s0 + $0x1] sm:$0xff]
    %v50 = vld [vmem:[%s0 + $0x9] sm:$0xff]
    %v51 = vld [vmem:[%s0 + $0x19] sm:$0xff]
    %v52 = vld [vmem:[%s0 + $0x21] sm:$0xff]
    %v53 = vmax.f32 %v49, 0.0
    %v54 = vmax.f32 %v50, 0.0
    %v55 = vmax.f32 %v51, 0.0
    %v56 = vmax.f32 %v52, 0.0
    %s57 = scalar_lea.vmem [#allocation2], 72
    %v58 = vld [vmem:[%s57] sm:$0xff]
    %v59 = vld [vmem:[%s57 + $0x8] sm:$0xff]
    %v60 = vld [vmem:[%s57 + $0x10] sm:$0xff]
    %v61 = vld [vmem:[%s57 + $0x18] sm:$0xff]
    %v62 = vld [vmem:[%s57 + $0x20] sm:$0xff]
    %v63 = vld [vmem:[%s57 + $0x28] sm:$0xff]
    %v64 = vld [vmem:[%s57 + $0x30] sm:$0xff]
    %v65 = vld [vmem:[%s57 + $0x38] sm:$0xff]
    %v66 = vld [vmem:[%s57 + $0x40] sm:$0xff]
    %vm67 = vcmask 588800
    %v69 = vsel %vm67, %v53, 0
    %v72 = vsel %vm67, %v54, 0
    %v75 = vsel %vm67, %v55, 0
    %v78 = vsel %vm67, %v56, 0
    %80 = vmatprep.subr.mxu0 0.0
    %81 = vmatpush1.msra.mxu0 %v58
    %82 = vmatprep.subr.mxu0 0.0
    %83 = vmatpush1.msra.mxu0 %v59
    %84 = vmatprep.subr.mxu0 0.0
    %85 = vmatpush1.msra.mxu0 %v60
    %86 = vmatprep.subr.mxu0 0.0
    %87 = vmatpush1.msra.mxu0 %v61
    %88 = vmatprep.subr.mxu0 0.0
    %89 = vmatpush1.msra.mxu0 %v62
    %90 = vmatprep.subr.mxu0 0.0
    %91 = vmatpush1.msra.mxu0 %v63
    %92 = vmatprep.subr.mxu0 0.0
    %93 = vmatpush1.msra.mxu0 %v64
    %94 = vmatprep.subr.mxu0 0.0
    %95 = vmatpush1.msra.mxu0 %v65
    %96 = vmatprep.subr.mxu0 0.0
    %97 = vmatpush1.msra.mxu0 %v66
    %98 = vmatprep.subr.mxu0 0.0
    %99 = vmatpush1.msra.mxu0 0.0
    %100 = vmatprep.subr.mxu0 0.0
    %101 = vmatpush1.msra.mxu0 0.0
    %102 = vmatprep.subr.mxu0 0.0
    %103 = vmatpush1.msra.mxu0 0.0
    %104 = vmatprep.subr.mxu0 0.0
    %105 = vmatpush1.msra.mxu0 0.0
    %106 = vmatprep.subr.mxu0 0.0
    %107 = vmatpush1.msra.mxu0 0.0
    %108 = vmatprep.subr.mxu0 0.0
    %109 = vmatpush1.msra.mxu0 0.0
    %110 = vmatprep.subr.mxu0 0.0
    %111 = vmatpush1.msra.mxu0 0.0
    %112 = vmatprep.subr.mxu0 0.0
    %113 = vmatpush1.msra.mxu0 0.0
    %114 = vmatprep.subr.mxu0 0.0
    %115 = vmatpush1.msra.mxu0 0.0
    %116 = vmatprep.subr.mxu0 0.0
    %117 = vmatpush1.msra.mxu0 0.0
    %118 = vmatprep.subr.mxu0 0.0
    %119 = vmatpush1.msra.mxu0 0.0
    %120 = vmatprep.subr.mxu0 0.0
    %121 = vmatpush1.msra.mxu0 0.0
    %122 = vmatprep.subr.mxu0 0.0
    %123 = vmatpush1.msra.mxu0 0.0
    %124 = vmatprep.subr.mxu0 0.0
    %125 = vmatpush1.msra.mxu0 0.0
    %126 = vmatprep.subr.mxu0 0.0
    %127 = vmatpush1.msra.mxu0 0.0
    %128 = vmatprep.subr.mxu0 0.0
    %129 = vmatpush1.msra.mxu0 0.0
    %130 = vmatprep.subr.mxu0 0.0
    %131 = vmatpush1.msra.mxu0 0.0
    %132 = vmatprep.subr.mxu0 0.0
    %133 = vmatpush1.msra.mxu0 0.0
    %134 = vmatprep.subr.mxu0 0.0
    %135 = vmatpush1.msra.mxu0 0.0
    %136 = vmatprep.subr.mxu0 0.0
    %137 = vmatpush1.msra.mxu0 0.0
    %138 = vmatprep.subr.mxu0 0.0
    %139 = vmatpush1.msra.mxu0 0.0
    %140 = vmatprep.subr.mxu0 0.0
    %141 = vmatpush1.msra.mxu0 0.0
    %142 = vmatprep.subr.mxu0 0.0
    %143 = vmatpush1.msra.mxu0 0.0
    %144 = vmatprep.mubr.f32.mxu0 0.0
    %145 = vmatmul.mubr.f32.gmra.mrb[0].mxu0 %v69
    %v146 = vpop.f32.mrb[0].mxu0
    %v147 = vadd.f32 0.0, %v146
    %v148 = vpop.f32.mrb[0].mxu0
    %149 = vmatprep.mubr.f32.mxu0 0.0
    %150 = vmatmul.mubr.f32.gmra.mrb[0].mxu0 %v72
    %v151 = vpop.f32.mrb[0].mxu0
    %v152 = vadd.f32 0.0, %v151
    %v153 = vpop.f32.mrb[0].mxu0
    %154 = vmatprep.mubr.f32.mxu0 0.0
    %155 = vmatmul.mubr.f32.gmra.mrb[0].mxu0 %v75
    %v156 = vpop.f32.mrb[0].mxu0
    %v157 = vadd.f32 0.0, %v156
    %v158 = vpop.f32.mrb[0].mxu0
    %159 = vmatprep.mubr.f32.mxu0 0.0
    %160 = vmatmul.mubr.f32.gmra.mrb[0].mxu0 %v78
    %v161 = vpop.f32.mrb[0].mxu0
    %v162 = vadd.f32 0.0, %v161
    %v163 = vpop.f32.mrb[0].mxu0
    %164 = vdwg.mxu0
    %v166 = vsel %vm67, %v36, 0
    %v169 = vsel %vm67, %v37, 0
    %v172 = vsel %vm67, %v38, 0
    %v175 = vsel %vm67, %v39, 0
    %177 = vmatprep.subr.mxu0 0.0
    %178 = vmatpush1.msra.mxu0 %v40
    %179 = vmatprep.subr.mxu0 0.0
    %180 = vmatpush1.msra.mxu0 %v41
    %181 = vmatprep.subr.mxu0 0.0
    %182 = vmatpush1.msra.mxu0 %v42
    %183 = vmatprep.subr.mxu0 0.0
    %184 = vmatpush1.msra.mxu0 %v43
    %185 = vmatprep.subr.mxu0 0.0
    %186 = vmatpush1.msra.mxu0 %v44
    %187 = vmatprep.subr.mxu0 0.0
    %188 = vmatpush1.msra.mxu0 %v45
    %189 = vmatprep.subr.mxu0 0.0
    %190 = vmatpush1.msra.mxu0 %v46
    %191 = vmatprep.subr.mxu0 0.0
    %192 = vmatpush1.msra.mxu0 %v47
    %193 = vmatprep.subr.mxu0 0.0
    %194 = vmatpush1.msra.mxu0 %v48
    %195 = vmatprep.subr.mxu0 0.0
    %196 = vmatpush1.msra.mxu0 0.0
    %197 = vmatprep.subr.mxu0 0.0
    %198 = vmatpush1.msra.mxu0 0.0
    %199 = vmatprep.subr.mxu0 0.0
    %200 = vmatpush1.msra.mxu0 0.0
    %201 = vmatprep.subr.mxu0 0.0
    %202 = vmatpush1.msra.mxu0 0.0
    %203 = vmatprep.subr.mxu0 0.0
    %204 = vmatpush1.msra.mxu0 0.0
    %205 = vmatprep.subr.mxu0 0.0
    %206 = vmatpush1.msra.mxu0 0.0
    %207 = vmatprep.subr.mxu0 0.0
    %208 = vmatpush1.msra.mxu0 0.0
    %209 = vmatprep.subr.mxu0 0.0
    %210 = vmatpush1.msra.mxu0 0.0
    %211 = vmatprep.subr.mxu0 0.0
    %212 = vmatpush1.msra.mxu0 0.0
    %213 = vmatprep.subr.mxu0 0.0
    %214 = vmatpush1.msra.mxu0 0.0
    %215 = vmatprep.subr.mxu0 0.0
    %216 = vmatpush1.msra.mxu0 0.0
    %217 = vmatprep.subr.mxu0 0.0
    %218 = vmatpush1.msra.mxu0 0.0
    %219 = vmatprep.subr.mxu0 0.0
    %220 = vmatpush1.msra.mxu0 0.0
    %221 = vmatprep.subr.mxu0 0.0
    %222 = vmatpush1.msra.mxu0 0.0
    %223 = vmatprep.subr.mxu0 0.0
    %224 = vmatpush1.msra.mxu0 0.0
    %225 = vmatprep.subr.mxu0 0.0
    %226 = vmatpush1.msra.mxu0 0.0
    %227 = vmatprep.subr.mxu0 0.0
    %228 = vmatpush1.msra.mxu0 0.0
    %229 = vmatprep.subr.mxu0 0.0
    %230 = vmatpush1.msra.mxu0 0.0
    %231 = vmatprep.subr.mxu0 0.0
    %232 = vmatpush1.msra.mxu0 0.0
    %233 = vmatprep.subr.mxu0 0.0
    %234 = vmatpush1.msra.mxu0 0.0
    %235 = vmatprep.subr.mxu0 0.0
    %236 = vmatpush1.msra.mxu0 0.0
    %237 = vmatprep.subr.mxu0 0.0
    %238 = vmatpush1.msra.mxu0 0.0
    %239 = vmatprep.subr.mxu0 0.0
    %240 = vmatpush1.msra.mxu0 0.0
    %241 = vmatprep.mubr.f32.mxu0 0.0
    %242 = vmatmul.mubr.f32.gmra.mrb[0].mxu0 %v166
    %v243 = vpop.f32.mrb[0].mxu0
    %v244 = vadd.f32 %v147, %v243
    %v245 = vpop.f32.mrb[0].mxu0
    %246 = vmatprep.mubr.f32.mxu0 0.0
    %247 = vmatmul.mubr.f32.gmra.mrb[0].mxu0 %v169
    %v248 = vpop.f32.mrb[0].mxu0
    %v249 = vadd.f32 %v152, %v248
    %v250 = vpop.f32.mrb[0].mxu0
    %251 = vmatprep.mubr.f32.mxu0 0.0
    %252 = vmatmul.mubr.f32.gmra.mrb[0].mxu0 %v172
    %v253 = vpop.f32.mrb[0].mxu0
    %v254 = vadd.f32 %v157, %v253
    %v255 = vpop.f32.mrb[0].mxu0
    %256 = vmatprep.mubr.f32.mxu0 0.0
    %257 = vmatmul.mubr.f32.gmra.mrb[0].mxu0 %v175
    %v258 = vpop.f32.mrb[0].mxu0
    %v259 = vadd.f32 %v162, %v258
    %v260 = vpop.f32.mrb[0].mxu0
    %261 = vdwg.mxu0
    %v262 = vld [vmem:[%s0 + $0x2] sm:$0xff]
    %v263 = vld [vmem:[%s0 + $0xa] sm:$0xff]
    %v264 = vld [vmem:[%s0 + $0x1a] sm:$0xff]
    %v265 = vld [vmem:[%s0 + $0x22] sm:$0xff]
    %v266 = vmax.f32 %v262, 0.0
    %v267 = vmax.f32 %v263, 0.0
    %v268 = vmax.f32 %v264, 0.0
    %v269 = vmax.f32 %v265, 0.0
    %s270 = scalar_lea.vmem [#allocation2], 144
    %v271 = vld [vmem:[%s270] sm:$0xff]
    %v272 = vld [vmem:[%s270 + $0x8] sm:$0xff]
    %v273 = vld [vmem:[%s270 + $0x10] sm:$0xff]
    %v274 = vld [vmem:[%s270 + $0x18] sm:$0xff]
    %v275 = vld [vmem:[%s270 + $0x20] sm:$0xff]
    %v276 = vld [vmem:[%s270 + $0x28] sm:$0xff]
    %v277 = vld [vmem:[%s270 + $0x30] sm:$0xff]
    %v278 = vld [vmem:[%s270 + $0x38] sm:$0xff]
    %v279 = vld [vmem:[%s270 + $0x40] sm:$0xff]
    %v281 = vsel %vm67, %v266, 0
    %v284 = vsel %vm67, %v267, 0
    %v287 = vsel %vm67, %v268, 0
    %v290 = vsel %vm67, %v269, 0
    %292 = vmatprep.subr.mxu0 0.0
    %293 = vmatpush1.msra.mxu0 %v271
    %294 = vmatprep.subr.mxu0 0.0
    %295 = vmatpush1.msra.mxu0 %v272
    %296 = vmatprep.subr.mxu0 0.0
    %297 = vmatpush1.msra.mxu0 %v273
    %298 = vmatprep.subr.mxu0 0.0
    %299 = vmatpush1.msra.mxu0 %v274
    %300 = vmatprep.subr.mxu0 0.0
    %301 = vmatpush1.msra.mxu0 %v275
    %302 = vmatprep.subr.mxu0 0.0
    %303 = vmatpush1.msra.mxu0 %v276
    %304 = vmatprep.subr.mxu0 0.0
    %305 = vmatpush1.msra.mxu0 %v277
    %306 = vmatprep.subr.mxu0 0.0
    %307 = vmatpush1.msra.mxu0 %v278
    %308 = vmatprep.subr.mxu0 0.0
    %309 = vmatpush1.msra.mxu0 %v279
    %310 = vmatprep.subr.mxu0 0.0
    %311 = vmatpush1.msra.mxu0 0.0
    %312 = vmatprep.subr.mxu0 0.0
    %313 = vmatpush1.msra.mxu0 0.0
    %314 = vmatprep.subr.mxu0 0.0
    %315 = vmatpush1.msra.mxu0 0.0
    %316 = vmatprep.subr.mxu0 0.0
    %317 = vmatpush1.msra.mxu0 0.0
    %318 = vmatprep.subr.mxu0 0.0
    %319 = vmatpush1.msra.mxu0 0.0
    %320 = vmatprep.subr.mxu0 0.0
    %321 = vmatpush1.msra.mxu0 0.0
    %322 = vmatprep.subr.mxu0 0.0
    %323 = vmatpush1.msra.mxu0 0.0
    %324 = vmatprep.subr.mxu0 0.0
    %325 = vmatpush1.msra.mxu0 0.0
    %326 = vmatprep.subr.mxu0 0.0
    %327 = vmatpush1.msra.mxu0 0.0
    %328 = vmatprep.subr.mxu0 0.0
    %329 = vmatpush1.msra.mxu0 0.0
    %330 = vmatprep.subr.mxu0 0.0
    %331 = vmatpush1.msra.mxu0 0.0
    %332 = vmatprep.subr.mxu0 0.0
    %333 = vmatpush1.msra.mxu0 0.0
    %334 = vmatprep.subr.mxu0 0.0
    %335 = vmatpush1.msra.mxu0 0.0
    %336 = vmatprep.subr.mxu0 0.0
    %337 = vmatpush1.msra.mxu0 0.0
    %338 = vmatprep.subr.mxu0 0.0
    %339 = vmatpush1.msra.mxu0 0.0
    %340 = vmatprep.subr.mxu0 0.0
    %341 = vmatpush1.msra.mxu0 0.0
    %342 = vmatprep.subr.mxu0 0.0
    %343 = vmatpush1.msra.mxu0 0.0
    %344 = vmatprep.subr.mxu0 0.0
    %345 = vmatpush1.msra.mxu0 0.0
    %346 = vmatprep.subr.mxu0 0.0
    %347 = vmatpush1.msra.mxu0 0.0
    %348 = vmatprep.subr.mxu0 0.0
    %349 = vmatpush1.msra.mxu0 0.0
    %350 = vmatprep.subr.mxu0 0.0
    %351 = vmatpush1.msra.mxu0 0.0
    %352 = vmatprep.subr.mxu0 0.0
    %353 = vmatpush1.msra.mxu0 0.0
    %354 = vmatprep.subr.mxu0 0.0
    %355 = vmatpush1.msra.mxu0 0.0
    %356 = vmatprep.mubr.f32.mxu0 0.0
    %357 = vmatmul.mubr.f32.gmra.mrb[0].mxu0 %v281
    %v358 = vpop.f32.mrb[0].mxu0
    %v359 = vadd.f32 0.0, %v358
    %v360 = vpop.f32.mrb[0].mxu0
    %361 = vmatprep.mubr.f32.mxu0 0.0
    %362 = vmatmul.mubr.f32.gmra.mrb[0].mxu0 %v284
    %v363 = vpop.f32.mrb[0].mxu0
    %v364 = vadd.f32 0.0, %v363
    %v365 = vpop.f32.mrb[0].mxu0
    %366 = vmatprep.mubr.f32.mxu0 0.0
    %367 = vmatmul.mubr.f32.gmra.mrb[0].mxu0 %v287
    %v368 = vpop.f32.mrb[0].mxu0
    %v369 = vadd.f32 0.0, %v368
    %v370 = vpop.f32.mrb[0].mxu0
    %371 = vmatprep.mubr.f32.mxu0 0.0
    %372 = vmatmul.mubr.f32.gmra.mrb[0].mxu0 %v290
    %v373 = vpop.f32.mrb[0].mxu0
    %v374 = vadd.f32 0.0, %v373
    %v375 = vpop.f32.mrb[0].mxu0
    %376 = vdwg.mxu0
    %v377 = vadd.f32 %v244, %v359
    %v378 = vadd.f32 %v249, %v364
    %v379 = vadd.f32 %v254, %v369
    %v380 = vadd.f32 %v259, %v374
    %v381 = vadd.f32 %v377, %v378
    %v382 = vadd.f32 %v381, %v379
    %v383 = vadd.f32 %v382, %v380
    %v384 = vrot.slane %v383, 4
    %v385 = vadd.f32 %v383, %v384
    %v386 = vrot.slane %v385, 2
    %v387 = vadd.f32 %v385, %v386
    %v388 = vrot.slane %v387, 1
    %v389 = vadd.f32 %v387, %v388
    %v390 = vmul.f32 %v377, %v377
    %v391 = vmul.f32 %v378, %v378
    %v392 = vmul.f32 %v379, %v379
    %v393 = vmul.f32 %v380, %v380
    %v394 = vadd.f32 %v390, %v391
    %v395 = vadd.f32 %v394, %v392
    %v396 = vadd.f32 %v395, %v393
    %v397 = vrot.slane %v396, 4
    %v398 = vadd.f32 %v396, %v397
    %v399 = vrot.slane %v398, 2
    %v400 = vadd.f32 %v398, %v399
    %v401 = vrot.slane %v400, 1
    %v402 = vadd.f32 %v400, %v401
    %403 = vrot.lane.b32.xlu0 %v389, 64
    %v404 = vpop.permute.xlu0 %403
    %v405 = vadd.f32 %v389, %v404
    %406 = vrot.lane.b32.xlu0 %v402, 64
    %v407 = vpop.permute.xlu0 %406
    %v408 = vadd.f32 %v402, %v407
    %409 = vrot.lane.b32.xlu0 %v405, 32
    %v410 = vpop.permute.xlu0 %409
    %v411 = vadd.f32 %v405, %v410
    %412 = vrot.lane.b32.xlu0 %v408, 32
    %v413 = vpop.permute.xlu0 %412
    %v414 = vadd.f32 %v408, %v413
    %415 = vrot.lane.b32.xlu0 %v411, 16
    %v416 = vpop.permute.xlu0 %415
    %v417 = vadd.f32 %v411, %v416
    %418 = vrot.lane.b32.xlu0 %v414, 16
    %v419 = vpop.permute.xlu0 %418
    %v420 = vadd.f32 %v414, %v419
    %421 = vrot.lane.b32.xlu0 %v417, 8
    %v422 = vpop.permute.xlu0 %421
    %v423 = vadd.f32 %v417, %v422
    %424 = vrot.lane.b32.xlu0 %v420, 8
    %v425 = vpop.permute.xlu0 %424
    %v426 = vadd.f32 %v420, %v425
    %v427 = vmul.f32 %v423, 0.001953125
    %v428 = vmul.f32 %v426, 0.001953125
    %v429 = vmul.f32 %v427, %v427
    %v430 = vsub.f32 %v428, %v429
    %v431 = vadd.f32 %v430, 1e-05
    %v432 = vrsqrt.pop %v431
    %v433 = vld [vmem:[%s2] sm:$0x1]
    %v434 = vmul.f32 %v432, %v433
    %v435 = vld [vmem:[%s3] sm:$0x1]
    %v436 = vmul.f32 %v427, %v434
    %v437 = vsub.f32 %v435, %v436
    %v438 = vlaneseq
    %v439 = vshrl.u32 %v438, 7
    %v440 = vsub.s32 0, %v439
    %v441 = vrot.slane %v434, %v440
    %v442 = vmul.f32 %v377, %v441
    %v443 = vmul.f32 %v378, %v441
    %v444 = vmul.f32 %v379, %v441
    %v445 = vmul.f32 %v380, %v441
    %v447 = vlaneseq
    %v448 = vshrl.u32 %v447, 7
    %v449 = vsub.s32 0, %v448
    %v450 = vrot.slane %v437, %v449
    %v452 = vadd.f32 %v442, %v450
    %v453 = vadd.f32 %v443, %v450
    %v454 = vadd.f32 %v444, %v450
    %v455 = vadd.f32 %v445, %v450
    %456 = vst [vmem:[#allocation5] sm:$0xff] %v452
    %457 = vst [vmem:[#allocation5 + $0x8] sm:$0xff] %v453
    %458 = vst [vmem:[#allocation5 + $0x10] sm:$0xff] %v454
    %459 = vst [vmem:[#allocation5 + $0x18] sm:$0xff] %v455
    // Predicated region
    $region22: #{tpu_custom_call.1} parent=1 // pred_check
      _
    $region23: #{tpu_custom_call.1} parent=1 // pred_check_branch
      %461 = sbr.rel (0) target = $region25
    $region24: #{tpu_custom_call.1} parent=1 // pred_region
      %s463 = ssub.s32 512, 512
      %464 = vsyncadd [#allocation4], %s463
      %s465 = sshll.u32 [#allocation5], 4
      %s466 = int_to_ptr.vmem [resolvable:$true] %s465
      %471 = dma.vmem_to_hbm [thread:$0]  %s466, 512, %s4, [#allocation4], 128, 128, 8
    $region25: #{tpu_custom_call.1} parent=1 // pred_fallthru
      _
    // Predicated region
    $region26: #{tpu_custom_call.1} parent=1 // pred_check
      _
    $region27: #{tpu_custom_call.1} parent=1 // pred_check_branch
      %473 = sbr.rel (0) target = $region29
    $region28: #{tpu_custom_call.1} parent=1 // pred_region
      %474 = dma.done [#allocation4], 512
    $region29: #{tpu_custom_call.1} parent=1 // pred_fallthru
      _
    %475 = vsyncpa [#allocation3], 1
    %476 = vsyncpa [#allocation4], 1

</llo_original>
